<compile_context>
chip_gen: v7x
topology: tpu7x:2x2x1
jax: 0.10.0
libtpu: 0.0.40
codegen_flags: <defaults>
</compile_context>

<pallas_src>
import functools

import jax
import jax.numpy as jnp
from jax.experimental import pallas as pl
from jax.experimental.pallas import tpu as pltpu

_LANES = 128


def _rmsle_kernel(pred_ref, act_ref, out_ref, *, rows_valid, tile_rows,
                  blocks_per_partial, need_mask):
    """Accumulates per-lane sums of (log1p(pred) - log1p(actual))^2.

    Grid: (num_partials ["parallel"], blocks_per_partial ["arbitrary"]).
    out_ref block is (1, 8, 128) f32, resident across the arbitrary axis.
    """
    i = pl.program_id(0)   # partial / core index           ("parallel")
    j = pl.program_id(1)   # row-block within this partial  ("arbitrary")

    @pl.when(j == 0)
    def _():
        out_ref[...] = jnp.zeros_like(out_ref)

    p = pred_ref[...].astype(jnp.float32)
    a = act_ref[...].astype(jnp.float32)
    d = jnp.log1p(p) - jnp.log1p(a)          # log(x + 1)
    sq = d * d

    if need_mask:
        # Row-level tail mask: rows >= rows_valid are either Pallas block
        # padding (garbage -> possibly NaN after log1p) or redundant clamped
        # blocks.  The select picks 0.0 there, so NaNs never propagate.
        # (Lane-tail of the last valid row is zero-padded on the host only when
        # n % 128 != 0; log1p(0) - log1p(0) == 0 contributes nothing.)
        rb = i * blocks_per_partial + j      # un-clamped global row-block id
        row0 = rb * tile_rows
        local_rows = jax.lax.broadcasted_iota(jnp.int32, (tile_rows, _LANES), 0)
        sq = jnp.where((row0 + local_rows) < rows_valid, sq, 0.0)

    # Sublane-aligned partial reduction: (tile_rows, 128) -> (tile_rows//8, 8, 128)
    # summed over axis 0 is pure VPU vreg adds; no XLU / no scalar serialization.
    out_ref[0, :, :] += sq.reshape(tile_rows // 8, 8, _LANES).sum(axis=0)


def rmsle_loss(pred, actual, *, tile_rows=1024, num_partials=2):
    """RMSLE(pred, actual) over all elements, computed in a Pallas TPU kernel."""
    assert pred.shape == actual.shape
    n = int(pred.size)
    assert n > 0

    # Lane-dense (rows, 128) view of the raveled inputs, native dtype.
    pred_f = jnp.ravel(pred)
    act_f = jnp.ravel(actual)
    rows = (n + _LANES - 1) // _LANES
    pad = rows * _LANES - n
    if pad:  # only copies when n is not a multiple of 128
        pred_f = jnp.pad(pred_f, (0, pad))
        act_f = jnp.pad(act_f, (0, pad))
    pred2 = pred_f.reshape(rows, _LANES)
    act2 = act_f.reshape(rows, _LANES)

    # Effective tile rows: clamp to the (16-rounded) row count, keep a multiple
    # of 16 so both f32 (8,128) and bf16 (16,128) tiling rules are satisfied.
    tr = max(16, min(int(tile_rows), ((rows + 15) // 16) * 16))
    tr = ((tr + 15) // 16) * 16

    nblk = (rows + tr - 1) // tr                 # total row-blocks
    p = max(1, min(int(num_partials), nblk))     # per-core partials (v7x megacore)
    bpp = (nblk + p - 1) // p                    # row-blocks per partial

    # Mask only needed if some block is partially padded or redundant.
    need_mask = (rows % tr != 0) or (p * bpp != nblk)

    # Clamp the block index so a possibly-redundant trailing step never DMAs
    # out of bounds; the kernel's (un-clamped) row mask zeroes its contribution.
    def in_map(i, j):
        return (jnp.minimum(i * bpp + j, nblk - 1), 0)

    kernel = functools.partial(
        _rmsle_kernel, rows_valid=rows, tile_rows=tr,
        blocks_per_partial=bpp, need_mask=need_mask)

    partials = pl.pallas_call(
        kernel,
        out_shape=jax.ShapeDtypeStruct((p, 8, _LANES), jnp.float32),
        grid_spec=pltpu.PrefetchScalarGridSpec(
            num_scalar_prefetch=0,
            grid=(p, bpp),
            in_specs=[
                pl.BlockSpec((tr, _LANES), in_map),
                pl.BlockSpec((tr, _LANES), in_map),
            ],
            out_specs=pl.BlockSpec((1, 8, _LANES), lambda i, j: (i, 0, 0)),
        ),
        compiler_params=pltpu.CompilerParams(
            # reduction axis last; leading axis shards across TCs on v7x
            dimension_semantics=("parallel", "arbitrary"),
        ),
    )(pred2, act2)

    # Tiny epilogue: combine per-core (8,128) partials, mean over ALL elements,
    # then sqrt (matches nn.MSELoss(reduction='mean') + torch.sqrt).
    total = jnp.sum(partials)
    return jnp.sqrt(total / jnp.float32(n))


def rmsle_ref(pred, actual):
    """Pure-JAX reference matching the PyTorch module."""
    d = jnp.log(pred.astype(jnp.float32) + 1.0) - jnp.log(actual.astype(jnp.float32) + 1.0)
    return jnp.sqrt(jnp.mean(d * d))


if __name__ == "__main__":
    key = jax.random.PRNGKey(0)
    k1, k2 = jax.random.split(key)

    # Primary check: NCHW tensor like the PyTorch regression loss would see.
    # n = 2048 -> single full block, mask compiled out (hot path).
    shape = (2, 4, 16, 16)
    # RMSLE expects non-negative inputs (log(x+1) defined) -> uniform [0, 10)
    pred = jax.random.uniform(k1, shape, dtype=jnp.float32, minval=0.0, maxval=10.0)
    actual = jax.random.uniform(k2, shape, dtype=jnp.float32, minval=0.0, maxval=10.0)

    loss = jax.block_until_ready(rmsle_loss(pred, actual))
    ref = jax.block_until_ready(rmsle_ref(pred, actual))
    assert jnp.allclose(loss, ref, rtol=1e-5, atol=1e-6), (loss, ref)

    # Secondary check: forces a multi-block grid with a small tile so the
    # 2-wide parallel split, the clamped redundant trailing block and the
    # in-kernel row tail mask are all exercised.
    shape2 = (2, 4, 24, 24)
    pred2 = jax.random.uniform(k1, shape2, dtype=jnp.float32, minval=0.0, maxval=10.0)
    actual2 = jax.random.uniform(k2, shape2, dtype=jnp.float32, minval=0.0, maxval=10.0)
    loss2 = jax.block_until_ready(rmsle_loss(pred2, actual2, tile_rows=16))
    ref2 = jax.block_until_ready(rmsle_ref(pred2, actual2))
    assert jnp.allclose(loss2, ref2, rtol=1e-5, atol=1e-6), (loss2, ref2)

    # Third check: n not a multiple of 128 -> exercises the host lane-tail pad
    # plus the in-kernel mask on a single partially-valid block.
    shape3 = (3, 5, 7)
    pred3 = jax.random.uniform(k1, shape3, dtype=jnp.float32, minval=0.0, maxval=10.0)
    actual3 = jax.random.uniform(k2, shape3, dtype=jnp.float32, minval=0.0, maxval=10.0)
    loss3 = jax.block_until_ready(rmsle_loss(pred3, actual3))
    ref3 = jax.block_until_ready(rmsle_ref(pred3, actual3))
    assert jnp.allclose(loss3, ref3, rtol=1e-5, atol=1e-6), (loss3, ref3)

    print("KERNEL_OK")
</pallas_src>

<mosaic_0001>
module attributes {stable_mosaic.version = 11 : i64} {
  func.func @_rmsle_kernel(%arg0: i32, %arg1: i32, %arg2: memref<16x128xf32, #tpu.memory_space<vmem>>, %arg3: memref<16x128xf32, #tpu.memory_space<vmem>>, %arg4: memref<1x8x128xf32, #tpu.memory_space<vmem>>) attributes {dimension_semantics = [#tpu.dimension_semantics<parallel>, #tpu.dimension_semantics<arbitrary>], iteration_bounds = array<i64: 1, 1>, scalar_prefetch = 0 : i64, scratch_operands = 0 : i64, tpu.core_type = #tpu.core_type<tc>, window_params = [{transform_indices = @transform_0, window_bounds = array<i64: 16, 128>}, {transform_indices = @transform_1, window_bounds = array<i64: 16, 128>}, {transform_indices = @transform_2, window_bounds = array<i64: 1, 8, 128>}]} {
    %c0_i32 = arith.constant 0 : i32
    %0 = arith.cmpi eq, %arg1, %c0_i32 : i32
    %1 = arith.extui %0 : i1 to i32
    %c0_i32_0 = arith.constant 0 : i32
    %2 = arith.cmpi ne, %1, %c0_i32_0 : i32
    scf.if %2 {
      %cst_10 = arith.constant 0.000000e+00 : f32
      %17 = vector.broadcast %cst_10 : f32 to vector<1x8x128xf32>
      %c0_11 = arith.constant 0 : index
      %c0_12 = arith.constant 0 : index
      %c0_13 = arith.constant 0 : index
      %18 = vector.load %arg4[%c0_11, %c0_12, %c0_13] : memref<1x8x128xf32, #tpu.memory_space<vmem>>, vector<1x8x128xf32>
      tpu.vector_store %arg4[%c0_11, %c0_12, %c0_13], %17 {strides = array<i32>} : memref<1x8x128xf32, #tpu.memory_space<vmem>>, vector<1x8x128xf32>,
    } else {
    }
    %c0 = arith.constant 0 : index
    %c0_1 = arith.constant 0 : index
    %3 = vector.load %arg2[%c0, %c0_1] : memref<16x128xf32, #tpu.memory_space<vmem>>, vector<16x128xf32>
    %c0_2 = arith.constant 0 : index
    %c0_3 = arith.constant 0 : index
    %4 = vector.load %arg3[%c0_2, %c0_3] : memref<16x128xf32, #tpu.memory_space<vmem>>, vector<16x128xf32>
    %5 = math.log1p %3 : vector<16x128xf32>
    %6 = math.log1p %4 : vector<16x128xf32>
    %7 = arith.subf %5, %6 : vector<16x128xf32>
    %8 = arith.mulf %7, %7 : vector<16x128xf32>
    %c0_4 = arith.constant 0 : index
    %c0_5 = arith.constant 0 : index
    %c0_6 = arith.constant 0 : index
    %9 = vector.load %arg4[%c0_4, %c0_5, %c0_6] : memref<1x8x128xf32, #tpu.memory_space<vmem>>, vector<1x8x128xf32>
    %10 = vector.shape_cast %9 : vector<1x8x128xf32> to vector<8x128xf32>
    %11 = vector.shape_cast %8 : vector<16x128xf32> to vector<2x8x128xf32>
    %cst = arith.constant dense<0.000000e+00> : vector<8x128xf32>
    %12 = vector.multi_reduction <add>, %11, %cst [0] : vector<2x8x128xf32> to vector<8x128xf32>
    %13 = arith.addf %10, %12 : vector<8x128xf32>
    %c0_7 = arith.constant 0 : index
    %c0_8 = arith.constant 0 : index
    %c0_9 = arith.constant 0 : index
    %14 = vector.load %arg4[%c0_7, %c0_8, %c0_9] : memref<1x8x128xf32, #tpu.memory_space<vmem>>, vector<1x8x128xf32>
    %15 = vector.shape_cast %14 : vector<1x8x128xf32> to vector<8x128xf32>
    %16 = vector.shape_cast %13 : vector<8x128xf32> to vector<1x8x128xf32>
    tpu.vector_store %arg4[%c0_7, %c0_8, %c0_9], %16 {strides = array<i32>} : memref<1x8x128xf32, #tpu.memory_space<vmem>>, vector<1x8x128xf32>,
    return
  }
  func.func @transform_0(%arg0: i32, %arg1: i32) -> (i32, i32) {
    %c1_i32 = arith.constant 1 : i32
    %0 = arith.muli %arg0, %c1_i32 : i32
    %1 = arith.addi %0, %arg1 : i32
    %c0_i32 = arith.constant 0 : i32
    %2 = arith.minsi %1, %c0_i32 : i32
    %c0_i32_0 = arith.constant 0 : i32
    %c0_i32_1 = arith.constant 0 : i32
    return %2, %c0_i32_0 : i32, i32
  }
  func.func @transform_1(%arg0: i32, %arg1: i32) -> (i32, i32) {
    %c1_i32 = arith.constant 1 : i32
    %0 = arith.muli %arg0, %c1_i32 : i32
    %1 = arith.addi %0, %arg1 : i32
    %c0_i32 = arith.constant 0 : i32
    %2 = arith.minsi %1, %c0_i32 : i32
    %c0_i32_0 = arith.constant 0 : i32
    %c0_i32_1 = arith.constant 0 : i32
    return %2, %c0_i32_0 : i32, i32
  }
  func.func @transform_2(%arg0: i32, %arg1: i32) -> (i32, i32, i32) {
    %c0_i32 = arith.constant 0 : i32
    %c0_i32_0 = arith.constant 0 : i32
    %c0_i32_1 = arith.constant 0 : i32
    return %arg0, %c0_i32, %c0_i32_0 : i32, i32, i32
  }
}

</mosaic_0001>

<llo_original>
// kernel: tpu_custom_call.1
$region0: #{tpu_custom_call.1}
  #allocation0 [shape = 'u32[]', space=smem, size = 0x4, offset = 0x4, fixed_abs, tag = 'smem constant byte address 0x4 - core index']
  #allocation1 [shape = 'u32[144,128]{1,0:T(1,128)}', space=vmem, size = 0x12000, scoped, tag = 'internal scratch']
  %s0 = inlined_call_operand.hbm [shape: f32[16,128], index: 0, kind: input, shape index: {}]
  %s1 = inlined_call_operand.hbm [shape: f32[16,128], index: 1, kind: input, shape index: {}]
  %s2 = inlined_call_operand.hbm [shape: f32[1,8,128], index: 2, kind: output, shape index: {}]
  %s3 = sld [smem:[#allocation0]]
  $region30: #{tpu_custom_call.1} parent=0
    _
  %s5 = ssub.s32 1, %s3
  %s6 = scalar_select 0, %s5, %s3
  $region1: #{tpu_custom_call.1} parent=0
    #allocation2 [shape = 'u8[8192]{0}', space=vmem, size = 0x2000, scoped, tag = 'input window, operand 0, single buffered']
    #allocation3 [shape = 's32[1]{0}', space=sflag, size = 0x4, scoped, tag = 'scoped memory for tpu_custom_call.1']
    #allocation4 [shape = 's32[1]{0}', space=sflag, size = 0x4, scoped, tag = 'scoped memory for tpu_custom_call.1']
    #allocation5 [shape = 'u8[8192]{0}', space=vmem, size = 0x2000, scoped, tag = 'input window, operand 1, single buffered']
    #allocation6 [shape = 's32[1]{0}', space=sflag, size = 0x4, scoped, tag = 'scoped memory for tpu_custom_call.1']
    #allocation7 [shape = 'u8[4096]{0}', space=vmem, size = 0x1000, scoped, tag = 'output window, operand 0, single buffered']
    %7 = vsyncpa [#allocation3], 0
    %8 = vsyncpa [#allocation6], 0
    %9 = vsyncpa [#allocation4], 0
    // Predicated region
    $region2: #{tpu_custom_call.1} parent=1 // pred_check
      _
    $region3: #{tpu_custom_call.1} parent=1 // pred_check_branch
      %11 = sbr.rel (0) target = $region5
    $region4: #{tpu_custom_call.1} parent=1 // pred_region
      %s12 = sadd.s32 0, 0
      %p13 = scmp.lt.s32.totalorder %s12, 0
      %s14 = scalar_select %p13, %s12, 0
      %s15 = smul.u32 2, %s14
      %s17 = ssub.s32 256, 256
      %18 = vsyncadd [#allocation3], %s17
      %s19 = smul.addr %s15, 128
      %s20 = scalar_lea.hbm %s0, %s19
      %s21 = sshll.u32 [#allocation2], 4
      %s22 = int_to_ptr.vmem [resolvable:$true] %s21
      %27 = dma.hbm_to_vmem [thread:$0]  %s20, 256, %s22, [#allocation3], 128, 128, 8
    $region5: #{tpu_custom_call.1} parent=1 // pred_fallthru
      _
    // Predicated region
    $region6: #{tpu_custom_call.1} parent=1 // pred_check
      _
    $region7: #{tpu_custom_call.1} parent=1 // pred_check_branch
      %29 = sbr.rel (0) target = $region9
    $region8: #{tpu_custom_call.1} parent=1 // pred_region
      %s30 = sadd.s32 0, 0
      %p31 = scmp.lt.s32.totalorder %s30, 0
      %s32 = scalar_select %p31, %s30, 0
      %s33 = smul.u32 2, %s32
      %s35 = ssub.s32 256, 256
      %36 = vsyncadd [#allocation6], %s35
      %s37 = smul.addr %s33, 128
      %s38 = scalar_lea.hbm %s1, %s37
      %s39 = sshll.u32 [#allocation5], 4
      %s40 = int_to_ptr.vmem [resolvable:$true] %s39
      %45 = dma.hbm_to_vmem [thread:$0]  %s38, 256, %s40, [#allocation6], 128, 128, 8
    $region9: #{tpu_custom_call.1} parent=1 // pred_fallthru
      _
    // Predicated region
    $region10: #{tpu_custom_call.1} parent=1 // pred_check
      _
    $region11: #{tpu_custom_call.1} parent=1 // pred_check_branch
      %47 = sbr.rel (0) target = $region13
    $region12: #{tpu_custom_call.1} parent=1 // pred_region
      %48 = dma.done [#allocation3], 256
    $region13: #{tpu_custom_call.1} parent=1 // pred_fallthru
      _
    // Predicated region
    $region14: #{tpu_custom_call.1} parent=1 // pred_check
      _
    $region15: #{tpu_custom_call.1} parent=1 // pred_check_branch
      %50 = sbr.rel (0) target = $region17
    $region16: #{tpu_custom_call.1} parent=1 // pred_region
      %51 = dma.done [#allocation6], 256
    $region17: #{tpu_custom_call.1} parent=1 // pred_fallthru
      _
    %s52 = sadd.s32 0, 0
    %p53 = scmp.lt.s32.totalorder %s52, 0
    %s54 = scalar_select %p53, %s52, 0
    %s55 = smul.u32 2, %s54
    %s56 = sadd.s32 0, 0
    %p57 = scmp.lt.s32.totalorder %s56, 0
    %s58 = scalar_select %p57, %s56, 0
    %s59 = smul.u32 2, %s58
    %p60 = scmp.eq.s32.totalorder 0, 0
    // Predicated region
    $region18: #{tpu_custom_call.1} parent=1 // pred_check
      %p61 = pneg %p60
    $region19: #{tpu_custom_call.1} parent=1 // pred_check_branch
      %63 = sbr.rel (%p61) target = $region21
    $region20: #{tpu_custom_call.1} parent=1 // pred_region
      %64 = vst [vmem:[#allocation7] sm:$0xff] 0.0
    $region21: #{tpu_custom_call.1} parent=1 // pred_fallthru
      _
    %v65 = vld [vmem:[#allocation2] sm:$0xff]
    %v66 = vld [vmem:[#allocation2 + $0x8] sm:$0xff]
    %v67 = vld [vmem:[#allocation5] sm:$0xff]
    %v68 = vld [vmem:[#allocation5 + $0x8] sm:$0xff]
    %v69 = vadd.f32 %v65, 1.0
    %v70 = vlog2.pop %v69
    %v71 = vmul.f32 %v70, 0.6931472
    %v72 = vmul.f32 -0.5, %v65
    %v73 = vadd.f32 %v72, 1.0
    %v74 = vmul.f32 %v73, %v65
    %v75 = vand.u32 2147483647, %v65
    %vm76 = vcmp.lt.f32.partialorder %v75, 0.0004427343
    %v77 = vsel %vm76, %v74, %v71
    %v78 = vadd.f32 %v66, 1.0
    %v79 = vlog2.pop %v78
    %v80 = vmul.f32 %v79, 0.6931472
    %v81 = vmul.f32 -0.5, %v66
    %v82 = vadd.f32 %v81, 1.0
    %v83 = vmul.f32 %v82, %v66
    %v84 = vand.u32 2147483647, %v66
    %vm85 = vcmp.lt.f32.partialorder %v84, 0.0004427343
    %v86 = vsel %vm85, %v83, %v80
    %v87 = vadd.f32 %v67, 1.0
    %v88 = vlog2.pop %v87
    %v89 = vmul.f32 %v88, 0.6931472
    %v90 = vmul.f32 -0.5, %v67
    %v91 = vadd.f32 %v90, 1.0
    %v92 = vmul.f32 %v91, %v67
    %v93 = vand.u32 2147483647, %v67
    %vm94 = vcmp.lt.f32.partialorder %v93, 0.0004427343
    %v95 = vsel %vm94, %v92, %v89
    %v96 = vadd.f32 %v68, 1.0
    %v97 = vlog2.pop %v96
    %v98 = vmul.f32 %v97, 0.6931472
    %v99 = vmul.f32 -0.5, %v68
    %v100 = vadd.f32 %v99, 1.0
    %v101 = vmul.f32 %v100, %v68
    %v102 = vand.u32 2147483647, %v68
    %vm103 = vcmp.lt.f32.partialorder %v102, 0.0004427343
    %v104 = vsel %vm103, %v101, %v98
    %v105 = vsub.f32 %v77, %v95
    %v106 = vsub.f32 %v86, %v104
    %v107 = vmul.f32 %v105, %v105
    %v108 = vmul.f32 %v106, %v106
    %v109 = vld [vmem:[#allocation7] sm:$0xff]
    %v110 = vadd.f32 %v107, %v108
    %v111 = vadd.f32 %v109, %v110
    %112 = vst [vmem:[#allocation7] sm:$0xff] %v111
    // Predicated region
    $region22: #{tpu_custom_call.1} parent=1 // pred_check
      _
    $region23: #{tpu_custom_call.1} parent=1 // pred_check_branch
      %114 = sbr.rel (0) target = $region25
    $region24: #{tpu_custom_call.1} parent=1 // pred_region
      %s116 = ssub.s32 128, 128
      %117 = vsyncadd [#allocation4], %s116
      %s119 = sshll.u32 [#allocation7], 4
      %s120 = int_to_ptr.vmem [resolvable:$true] %s119
      %122 = dma.vmem_to_hbm [thread:$0]  %s120, 128, %s2, [#allocation4]
    $region25: #{tpu_custom_call.1} parent=1 // pred_fallthru
      _
    // Predicated region
    $region26: #{tpu_custom_call.1} parent=1 // pred_check
      _
    $region27: #{tpu_custom_call.1} parent=1 // pred_check_branch
      %124 = sbr.rel (0) target = $region29
    $region28: #{tpu_custom_call.1} parent=1 // pred_region
      %125 = dma.done [#allocation4], 128
    $region29: #{tpu_custom_call.1} parent=1 // pred_fallthru
      _
    %126 = vsyncpa [#allocation3], 1
    %127 = vsyncpa [#allocation6], 1
    %128 = vsyncpa [#allocation4], 1

</llo_original>
